<compile_context>
chip_gen: v5e
topology: v5e:2x2
jax: 0.10.0
libtpu: 0.0.40
codegen_flags: <defaults>
</compile_context>

<pallas_src>
import functools

import jax
import jax.numpy as jnp
from jax import lax
from jax.experimental import pallas as pl
from jax.experimental.pallas import tpu as pltpu

MAX_TILE_B = 2048            # rows per grid step, upper bound (multiple of 256)
MIN_TILE_B = 256
MIN_PALLAS_ROWS = 1024       # below this the plain-XLA fallback wins on overhead
_STEP_OVERHEAD_ROWS = 128    # per-grid-step overhead expressed in row-equivalents


def _round_up(x, m):
    return -(-x // m) * m


def _choose_tile_b(rows):
    """Pick TILE_B (multiple of 256, <= MAX_TILE_B):
       1) prefer grids with >= 2 steps when the batch allows it (v7x megacore),
       2) then minimize padded rows + per-step overhead,
       3) tie-break towards larger tiles (fewer grid steps)."""
    best = None
    for tile in range(MIN_TILE_B, MAX_TILE_B + 1, 256):
        padded = _round_up(rows, tile)
        steps = padded // tile
        key = (0 if steps >= 2 else 1,
               padded + steps * _STEP_OVERHEAD_ROWS,
               -tile)
        if best is None or key < best[0]:
            best = (key, tile)
    return best[1]


def _mlp_kernel(x_ref, w1t_ref, b1_ref, w2t_ref, b2_ref, o_ref):
    """Fused Linear -> ReLU -> Linear for one batch tile, computed transposed so
    the batch dim sits on the 128-wide lane axis (dense loads / dense stores)."""
    # h_t[j, b] = sum_s w1t[j, s] * x[b, s]   -> (H, TILE_B)   (NT matmul on MXU)
    h_t = lax.dot_general(
        w1t_ref[...], x_ref[...],
        dimension_numbers=(((1,), (1,)), ((), ())),
        preferred_element_type=jnp.float32)
    h_t = jnp.maximum(h_t + b1_ref[...], 0.0)        # (H,1) bias bcast + ReLU, f32
    # y_t[a, b] = sum_j w2t[a, j] * h_t[j, b] -> (A, TILE_B)   (plain NN matmul)
    y_t = jnp.dot(w2t_ref[...], h_t, preferred_element_type=jnp.float32)
    o_ref[...] = (y_t + b2_ref[...]).astype(o_ref.dtype)


@functools.partial(jax.jit, static_argnames=("tile_b",))
def _dqn_forward_pallas_2d(x2d, w1, b1, w2, b2, *, tile_b):
    batch, state_size = x2d.shape
    hidden = w1.shape[1]
    action_size = w2.shape[1]

    padded = _round_up(batch, tile_b)
    if padded != batch:
        # Zero-pad ragged batches; padded rows are sliced off below and the kernel
        # has no cross-row reductions, so their values are irrelevant.
        x2d = jnp.pad(x2d, ((0, padded - batch), (0, 0)))

    # Tiny parameter transposes/reshapes (a few KiB) so the kernel's matmuls are
    # native MXU forms and the biases broadcast along the lane axis.
    w1_t = w1.T.astype(jnp.float32)                      # (H, S)
    w2_t = w2.T.astype(jnp.float32)                      # (A, H)
    b1_c = b1.reshape(hidden, 1).astype(jnp.float32)     # (H, 1)
    b2_c = b2.reshape(action_size, 1).astype(jnp.float32)

    out_t = pl.pallas_call(
        _mlp_kernel,
        out_shape=jax.ShapeDtypeStruct((action_size, padded), jnp.float32),
        grid=(padded // tile_b,),
        in_specs=[
            pl.BlockSpec((tile_b, state_size), lambda i: (i, 0)),    # x: streamed f32
            pl.BlockSpec((hidden, state_size), lambda i: (0, 0)),    # w1^T: resident
            pl.BlockSpec((hidden, 1), lambda i: (0, 0)),             # b1: resident
            pl.BlockSpec((action_size, hidden), lambda i: (0, 0)),   # w2^T: resident
            pl.BlockSpec((action_size, 1), lambda i: (0, 0)),        # b2: resident
        ],
        out_specs=pl.BlockSpec((action_size, tile_b), lambda i: (0, i)),  # lane-dense
        compiler_params=pltpu.CompilerParams(
            dimension_semantics=("parallel",),          # megacore sharding on v7x
        ),
    )(x2d.astype(jnp.float32), w1_t, b1_c, w2_t, b2_c)

    return out_t[:, :batch].T                            # tiny (4, batch) transpose


@jax.jit
def _dqn_forward_xla(x2d, w1, b1, w2, b2):
    # Fallback for small batches (e.g. single-state act()): launch/step overhead
    # of the Pallas path dominates below ~1024 rows.
    return jnp.maximum(x2d @ w1 + b1, 0.0) @ w2 + b2


def dqn_forward(x, w1, b1, w2, b2, *, force_pallas=False):
    """Mirrors `DQN.forward`: 3-D inputs get unsqueeze(0); the Linear layers act
    on the last dim regardless of leading batch dims."""
    if x.ndim == 3:
        x = x[None, ...]  # torch unsqueeze(0)

    lead = x.shape[:-1]
    state_size = x.shape[-1]
    action_size = w2.shape[1]

    x2d = x.reshape(-1, state_size)
    rows = x2d.shape[0]

    if force_pallas or rows >= MIN_PALLAS_ROWS:
        out = _dqn_forward_pallas_2d(x2d, w1, b1, w2, b2,
                                     tile_b=_choose_tile_b(rows))
    else:
        out = _dqn_forward_xla(x2d, w1, b1, w2, b2)

    return out.reshape(lead + (action_size,))


def init_dqn_params(key, state_size, action_size, hidden=64, dtype=jnp.float32):
    """Deterministic init matching torch.nn.Linear's default U(-1/sqrt(fan_in), +...)."""
    k1, k2, k3, k4 = jax.random.split(key, 4)
    bound1 = 1.0 / jnp.sqrt(jnp.array(state_size, dtype))
    bound2 = 1.0 / jnp.sqrt(jnp.array(hidden, dtype))
    # Stored as [in, out] so the math is x @ W (== torch x @ W.T).
    w1 = jax.random.uniform(k1, (state_size, hidden), dtype, -bound1, bound1)
    b1 = jax.random.uniform(k2, (hidden,), dtype, -bound1, bound1)
    w2 = jax.random.uniform(k3, (hidden, action_size), dtype, -bound2, bound2)
    b2 = jax.random.uniform(k4, (action_size,), dtype, -bound2, bound2)
    return w1, b1, w2, b2


if __name__ == "__main__":
    key = jax.random.PRNGKey(0)
    k_x, k_x2, k_p = jax.random.split(key, 3)

    state_size, action_size, hidden = 8, 4, 64
    w1, b1, w2, b2 = init_dqn_params(k_p, state_size, action_size, hidden)

    def ref(x2d):
        h = jnp.maximum(
            jnp.dot(x2d, w1, precision=lax.Precision.HIGHEST) + b1, 0.0)
        return jnp.dot(h, w2, precision=lax.Precision.HIGHEST) + b2

    # 1) Small spec-sized batch forced through the Pallas kernel (single padded tile).
    x_small = jax.random.normal(k_x, (2, state_size), dtype=jnp.float32)
    q_small = dqn_forward(x_small, w1, b1, w2, b2, force_pallas=True)
    jax.block_until_ready(q_small)
    assert q_small.shape == (2, action_size)
    assert jnp.allclose(q_small, ref(x_small), atol=5e-2, rtol=5e-2), "mismatch (small)"

    # 2) Ragged multi-tile "replay" batch (600 rows -> tile 256 -> 3 grid steps + pad).
    x_big = jax.random.normal(k_x2, (600, state_size), dtype=jnp.float32)
    q_big = dqn_forward(x_big, w1, b1, w2, b2, force_pallas=True)
    jax.block_until_ready(q_big)
    assert q_big.shape == (600, action_size)
    assert jnp.allclose(q_big, ref(x_big), atol=5e-2, rtol=5e-2), "mismatch (big)"

    # 3) 3-D input takes torch's unsqueeze(0) path.
    x_3d = jax.random.normal(k_x, (3, 5, state_size), dtype=jnp.float32)
    q_3d = dqn_forward(x_3d, w1, b1, w2, b2, force_pallas=True)
    jax.block_until_ready(q_3d)
    assert q_3d.shape == (1, 3, 5, action_size)
    assert jnp.allclose(
        q_3d,
        ref(x_3d.reshape(-1, state_size)).reshape(1, 3, 5, action_size),
        atol=5e-2, rtol=5e-2), "mismatch (3d)"

    print("KERNEL_OK")
</pallas_src>

<mosaic_0001>
module attributes {stable_mosaic.version = 11 : i64} {
  func.func @_mlp_kernel(%arg0: i32, %arg1: memref<256x8xf32, #tpu.memory_space<vmem>>, %arg2: memref<64x8xf32, #tpu.memory_space<vmem>>, %arg3: memref<64x1xf32, #tpu.memory_space<vmem>>, %arg4: memref<4x64xf32, #tpu.memory_space<vmem>>, %arg5: memref<4x1xf32, #tpu.memory_space<vmem>>, %arg6: memref<4x256xf32, #tpu.memory_space<vmem>>) attributes {dimension_semantics = [#tpu.dimension_semantics<parallel>], iteration_bounds = array<i64: 1>, scalar_prefetch = 0 : i64, scratch_operands = 0 : i64, tpu.core_type = #tpu.core_type<tc>, window_params = [{transform_indices = @transform_0, window_bounds = array<i64: 256, 8>}, {pipeline_mode = #tpu.pipeline_mode<synchronous>, transform_indices = @transform_1, window_bounds = array<i64: 64, 8>}, {pipeline_mode = #tpu.pipeline_mode<synchronous>, transform_indices = @transform_2, window_bounds = array<i64: 64, 1>}, {pipeline_mode = #tpu.pipeline_mode<synchronous>, transform_indices = @transform_3, window_bounds = array<i64: 4, 64>}, {pipeline_mode = #tpu.pipeline_mode<synchronous>, transform_indices = @transform_4, window_bounds = array<i64: 4, 1>}, {transform_indices = @transform_5, window_bounds = array<i64: 4, 256>}]} {
    %c0 = arith.constant 0 : index
    %c0_0 = arith.constant 0 : index
    %0 = vector.load %arg2[%c0, %c0_0] : memref<64x8xf32, #tpu.memory_space<vmem>>, vector<64x8xf32>
    %c0_1 = arith.constant 0 : index
    %c0_2 = arith.constant 0 : index
    %1 = vector.load %arg1[%c0_1, %c0_2] : memref<256x8xf32, #tpu.memory_space<vmem>>, vector<256x8xf32>
    %cst = arith.constant dense<0.000000e+00> : vector<64x256xf32>
    %2 = tpu.matmul %0, %1, %cst {dimension_numbers = #tpu.dot_dimension_numbers<[1], [1], [0], [0], [0, 0, 1, 0], [], []>} : vector<64x8xf32>, vector<256x8xf32>, vector<64x256xf32> -> vector<64x256xf32>
    %c0_3 = arith.constant 0 : index
    %c0_4 = arith.constant 0 : index
    %3 = vector.load %arg3[%c0_3, %c0_4] : memref<64x1xf32, #tpu.memory_space<vmem>>, vector<64x1xf32>
    %4 = vector.broadcast %3 : vector<64x1xf32> to vector<64x256xf32>
    %5 = arith.addf %2, %4 : vector<64x256xf32>
    %cst_5 = arith.constant 0.000000e+00 : f32
    %6 = vector.broadcast %cst_5 : f32 to vector<64x256xf32>
    %7 = arith.maximumf %5, %6 : vector<64x256xf32>
    %c0_6 = arith.constant 0 : index
    %c0_7 = arith.constant 0 : index
    %8 = vector.load %arg4[%c0_6, %c0_7] : memref<4x64xf32, #tpu.memory_space<vmem>>, vector<4x64xf32>
    %cst_8 = arith.constant dense<0.000000e+00> : vector<4x256xf32>
    %9 = tpu.matmul %8, %7, %cst_8 {dimension_numbers = #tpu.dot_dimension_numbers<[1], [0], [0], [1], [0, 0, 1, 1], [], []>} : vector<4x64xf32>, vector<64x256xf32>, vector<4x256xf32> -> vector<4x256xf32>
    %c0_9 = arith.constant 0 : index
    %c0_10 = arith.constant 0 : index
    %10 = vector.load %arg5[%c0_9, %c0_10] : memref<4x1xf32, #tpu.memory_space<vmem>>, vector<4x1xf32>
    %11 = vector.broadcast %10 : vector<4x1xf32> to vector<4x256xf32>
    %12 = arith.addf %9, %11 : vector<4x256xf32>
    %c0_11 = arith.constant 0 : index
    %c0_12 = arith.constant 0 : index
    %13 = vector.load %arg6[%c0_11, %c0_12] : memref<4x256xf32, #tpu.memory_space<vmem>>, vector<4x256xf32>
    tpu.vector_store %arg6[%c0_11, %c0_12], %12 {strides = array<i32>} : memref<4x256xf32, #tpu.memory_space<vmem>>, vector<4x256xf32>,
    return
  }
  func.func @transform_0(%arg0: i32) -> (i32, i32) {
    %c0_i32 = arith.constant 0 : i32
    %c0_i32_0 = arith.constant 0 : i32
    return %arg0, %c0_i32 : i32, i32
  }
  func.func @transform_1(%arg0: i32) -> (i32, i32) {
    %c0_i32 = arith.constant 0 : i32
    %c0_i32_0 = arith.constant 0 : i32
    %c0_i32_1 = arith.constant 0 : i32
    return %c0_i32, %c0_i32_0 : i32, i32
  }
  func.func @transform_2(%arg0: i32) -> (i32, i32) {
    %c0_i32 = arith.constant 0 : i32
    %c0_i32_0 = arith.constant 0 : i32
    %c0_i32_1 = arith.constant 0 : i32
    return %c0_i32, %c0_i32_0 : i32, i32
  }
  func.func @transform_3(%arg0: i32) -> (i32, i32) {
    %c0_i32 = arith.constant 0 : i32
    %c0_i32_0 = arith.constant 0 : i32
    %c0_i32_1 = arith.constant 0 : i32
    return %c0_i32, %c0_i32_0 : i32, i32
  }
  func.func @transform_4(%arg0: i32) -> (i32, i32) {
    %c0_i32 = arith.constant 0 : i32
    %c0_i32_0 = arith.constant 0 : i32
    %c0_i32_1 = arith.constant 0 : i32
    return %c0_i32, %c0_i32_0 : i32, i32
  }
  func.func @transform_5(%arg0: i32) -> (i32, i32) {
    %c0_i32 = arith.constant 0 : i32
    %c0_i32_0 = arith.constant 0 : i32
    return %c0_i32, %arg0 : i32, i32
  }
}

</mosaic_0001>

<llo_original>
// kernel: _dqn_forward_pallas_2d.1
$region0: #{_dqn_forward_pallas_2d.1}
  #allocation0 [shape = 'u32[]', space=smem, size = 0x4, offset = 0x4, fixed_abs, tag = 'smem constant byte address 0x4 - core index']
  #allocation1 [shape = 'u32[72,128]{1,0:T(1,128)}', space=vmem, size = 0x9000, scoped, tag = 'internal scratch']
  %s0 = inlined_call_operand.vmem [shape: f32[256,8], index: 0, kind: input, shape index: {}]
  %s1 = inlined_call_operand.vmem [shape: f32[64,8], index: 1, kind: input, shape index: {}]
  %s2 = inlined_call_operand.vmem [shape: f32[64,1], index: 2, kind: input, shape index: {}]
  %s3 = inlined_call_operand.vmem [shape: f32[4,64], index: 3, kind: input, shape index: {}]
  %s4 = inlined_call_operand.vmem [shape: f32[4,1], index: 4, kind: input, shape index: {}]
  %s5 = inlined_call_operand.vmem [shape: f32[4,256], index: 5, kind: output, shape index: {}]
  %s6 = sld [smem:[#allocation0]]
  $region30: #{_dqn_forward_pallas_2d.1} parent=0
    _
  %s8 = ssub.s32 1, %s6
  %s9 = scalar_select 0, %s8, %s6
  // Predicated region
  $region2: #{_dqn_forward_pallas_2d.1} parent=0 // pred_check
    _
  $region3: #{_dqn_forward_pallas_2d.1} parent=0 // pred_check_branch
    %11 = sbr.rel (0) target = $region5
  $region4: #{_dqn_forward_pallas_2d.1} parent=0 // pred_region
    _
  $region5: #{_dqn_forward_pallas_2d.1} parent=0 // pred_fallthru
    _
  // Predicated region
  $region6: #{_dqn_forward_pallas_2d.1} parent=0 // pred_check
    _
  $region7: #{_dqn_forward_pallas_2d.1} parent=0 // pred_check_branch
    %13 = sbr.rel (0) target = $region9
  $region8: #{_dqn_forward_pallas_2d.1} parent=0 // pred_region
    _
  $region9: #{_dqn_forward_pallas_2d.1} parent=0 // pred_fallthru
    _
  // Predicated region
  $region10: #{_dqn_forward_pallas_2d.1} parent=0 // pred_check
    _
  $region11: #{_dqn_forward_pallas_2d.1} parent=0 // pred_check_branch
    %15 = sbr.rel (0) target = $region13
  $region12: #{_dqn_forward_pallas_2d.1} parent=0 // pred_region
    _
  $region13: #{_dqn_forward_pallas_2d.1} parent=0 // pred_fallthru
    _
  // Predicated region
  $region14: #{_dqn_forward_pallas_2d.1} parent=0 // pred_check
    _
  $region15: #{_dqn_forward_pallas_2d.1} parent=0 // pred_check_branch
    %17 = sbr.rel (0) target = $region17
  $region16: #{_dqn_forward_pallas_2d.1} parent=0 // pred_region
    _
  $region17: #{_dqn_forward_pallas_2d.1} parent=0 // pred_fallthru
    _
  // Predicated region
  $region18: #{_dqn_forward_pallas_2d.1} parent=0 // pred_check
    _
  $region19: #{_dqn_forward_pallas_2d.1} parent=0 // pred_check_branch
    %19 = sbr.rel (0) target = $region21
  $region20: #{_dqn_forward_pallas_2d.1} parent=0 // pred_region
    _
  $region21: #{_dqn_forward_pallas_2d.1} parent=0 // pred_fallthru
    _
  %v20 = vld [vmem:[%s1] sm:$0xff]
  %v21 = vld [vmem:[%s1 + $0x8] sm:$0xff]
  %v22 = vld [vmem:[%s1 + $0x10] sm:$0xff]
  %v23 = vld [vmem:[%s1 + $0x18] sm:$0xff]
  %v24 = vld [vmem:[%s1 + $0x20] sm:$0xff]
  %v25 = vld [vmem:[%s1 + $0x28] sm:$0xff]
  %v26 = vld [vmem:[%s1 + $0x30] sm:$0xff]
  %v27 = vld [vmem:[%s1 + $0x38] sm:$0xff]
  %v28 = vld [vmem:[%s0] sm:$0xff]
  %v29 = vld [vmem:[%s0 + $0x8] sm:$0xff]
  %v30 = vld [vmem:[%s0 + $0x10] sm:$0xff]
  %v31 = vld [vmem:[%s0 + $0x18] sm:$0xff]
  %v32 = vld [vmem:[%s0 + $0x20] sm:$0xff]
  %v33 = vld [vmem:[%s0 + $0x28] sm:$0xff]
  %v34 = vld [vmem:[%s0 + $0x30] sm:$0xff]
  %v35 = vld [vmem:[%s0 + $0x38] sm:$0xff]
  %v36 = vld [vmem:[%s0 + $0x40] sm:$0xff]
  %v37 = vld [vmem:[%s0 + $0x48] sm:$0xff]
  %v38 = vld [vmem:[%s0 + $0x50] sm:$0xff]
  %v39 = vld [vmem:[%s0 + $0x58] sm:$0xff]
  %v40 = vld [vmem:[%s0 + $0x60] sm:$0xff]
  %v41 = vld [vmem:[%s0 + $0x68] sm:$0xff]
  %v42 = vld [vmem:[%s0 + $0x70] sm:$0xff]
  %v43 = vld [vmem:[%s0 + $0x78] sm:$0xff]
  %v44 = vld [vmem:[%s0 + $0x80] sm:$0xff]
  %v45 = vld [vmem:[%s0 + $0x88] sm:$0xff]
  %v46 = vld [vmem:[%s0 + $0x90] sm:$0xff]
  %v47 = vld [vmem:[%s0 + $0x98] sm:$0xff]
  %v48 = vld [vmem:[%s0 + $0xa0] sm:$0xff]
  %v49 = vld [vmem:[%s0 + $0xa8] sm:$0xff]
  %v50 = vld [vmem:[%s0 + $0xb0] sm:$0xff]
  %v51 = vld [vmem:[%s0 + $0xb8] sm:$0xff]
  %v52 = vld [vmem:[%s0 + $0xc0] sm:$0xff]
  %v53 = vld [vmem:[%s0 + $0xc8] sm:$0xff]
  %v54 = vld [vmem:[%s0 + $0xd0] sm:$0xff]
  %v55 = vld [vmem:[%s0 + $0xd8] sm:$0xff]
  %v56 = vld [vmem:[%s0 + $0xe0] sm:$0xff]
  %v57 = vld [vmem:[%s0 + $0xe8] sm:$0xff]
  %v58 = vld [vmem:[%s0 + $0xf0] sm:$0xff]
  %v59 = vld [vmem:[%s0 + $0xf8] sm:$0xff]
  %v60 = vld [vmem:[%s2] sm:$0xff]
  %v61 = vld [vmem:[%s2 + $0x8] sm:$0xff]
  %v62 = vld [vmem:[%s2 + $0x10] sm:$0xff]
  %v63 = vld [vmem:[%s2 + $0x18] sm:$0xff]
  %v64 = vld [vmem:[%s2 + $0x20] sm:$0xff]
  %v65 = vld [vmem:[%s2 + $0x28] sm:$0xff]
  %v66 = vld [vmem:[%s2 + $0x30] sm:$0xff]
  %v67 = vld [vmem:[%s2 + $0x38] sm:$0xff]
  %69 = vset.pattern.permute.xlu0 0
  %70 = vperm.xlu0 %69, %v60
  %v71 = vpop.permute.xlu0 %70
  %74 = vset.pattern.permute.xlu0 0
  %75 = vperm.xlu0 %74, %v61
  %v76 = vpop.permute.xlu0 %75
  %79 = vset.pattern.permute.xlu0 0
  %80 = vperm.xlu0 %79, %v62
  %v81 = vpop.permute.xlu0 %80
  %84 = vset.pattern.permute.xlu0 0
  %85 = vperm.xlu0 %84, %v63
  %v86 = vpop.permute.xlu0 %85
  %89 = vset.pattern.permute.xlu0 0
  %90 = vperm.xlu0 %89, %v64
  %v91 = vpop.permute.xlu0 %90
  %94 = vset.pattern.permute.xlu0 0
  %95 = vperm.xlu0 %94, %v65
  %v96 = vpop.permute.xlu0 %95
  %99 = vset.pattern.permute.xlu0 0
  %100 = vperm.xlu0 %99, %v66
  %v101 = vpop.permute.xlu0 %100
  %104 = vset.pattern.permute.xlu0 0
  %105 = vperm.xlu0 %104, %v67
  %v106 = vpop.permute.xlu0 %105
  %vm108 = vcmask 64512
  %v110 = vsel %vm108, %v20, 0
  %v113 = vsel %vm108, %v21, 0
  %v116 = vsel %vm108, %v22, 0
  %v119 = vsel %vm108, %v23, 0
  %v122 = vsel %vm108, %v24, 0
  %v125 = vsel %vm108, %v25, 0
  %v128 = vsel %vm108, %v26, 0
  %v131 = vsel %vm108, %v27, 0
  %v134 = vsel %vm108, %v28, 0
  %v137 = vsel %vm108, %v29, 0
  %v140 = vsel %vm108, %v30, 0
  %v143 = vsel %vm108, %v31, 0
  %v146 = vsel %vm108, %v32, 0
  %v149 = vsel %vm108, %v33, 0
  %v152 = vsel %vm108, %v34, 0
  %v155 = vsel %vm108, %v35, 0
  %v158 = vsel %vm108, %v36, 0
  %v161 = vsel %vm108, %v37, 0
  %v164 = vsel %vm108, %v38, 0
  %v167 = vsel %vm108, %v39, 0
  %v170 = vsel %vm108, %v40, 0
  %v173 = vsel %vm108, %v41, 0
  %v176 = vsel %vm108, %v42, 0
  %v179 = vsel %vm108, %v43, 0
  %v182 = vsel %vm108, %v44, 0
  %v185 = vsel %vm108, %v45, 0
  %v188 = vsel %vm108, %v46, 0
  %v191 = vsel %vm108, %v47, 0
  %v194 = vsel %vm108, %v48, 0
  %v197 = vsel %vm108, %v49, 0
  %v200 = vsel %vm108, %v50, 0
  %v203 = vsel %vm108, %v51, 0
  %v206 = vsel %vm108, %v52, 0
  %v209 = vsel %vm108, %v53, 0
  %v212 = vsel %vm108, %v54, 0
  %v215 = vsel %vm108, %v55, 0
  %v218 = vsel %vm108, %v56, 0
  %v221 = vsel %vm108, %v57, 0
  %v224 = vsel %vm108, %v58, 0
  %v227 = vsel %vm108, %v59, 0
  %229 = vmatpush.xpose.msra.mxu0 %v179
  %230 = vmatpush.xpose.msra.mxu0 %v176
  %231 = vmatpush.xpose.msra.mxu0 %v173
  %232 = vmatpush.xpose.msra.mxu0 %v170
  %233 = vmatpush.xpose.msra.mxu0 %v167
  %234 = vmatpush.xpose.msra.mxu0 %v164
  %235 = vmatpush.xpose.msra.mxu0 %v161
  %236 = vmatpush.xpose.msra.mxu0 %v158
  %237 = vmatpush.xpose.msra.mxu0 %v155
  %238 = vmatpush.xpose.msra.mxu0 %v152
  %239 = vmatpush.xpose.msra.mxu0 %v149
  %240 = vmatpush.xpose.msra.mxu0 %v146
  %241 = vmatpush.xpose.msra.mxu0 %v143
  %242 = vmatpush.xpose.msra.mxu0 %v140
  %243 = vmatpush.xpose.msra.mxu0 %v137
  %244 = vmatpush.xpose.msra.mxu0 %v134
  %245 = vmatmul.f32.gmra.mxu0 %v110
  %v246 = vpop.f32.mrf.mxu0
  %v247 = vadd.f32 %v71, %v246
  %248 = vmatmul.f32.gmra.mxu0 %v113
  %v249 = vpop.f32.mrf.mxu0
  %v250 = vadd.f32 %v76, %v249
  %251 = vmatmul.f32.gmra.mxu0 %v116
  %v252 = vpop.f32.mrf.mxu0
  %v253 = vadd.f32 %v81, %v252
  %254 = vmatmul.f32.gmra.mxu0 %v119
  %v255 = vpop.f32.mrf.mxu0
  %v256 = vadd.f32 %v86, %v255
  %257 = vmatmul.f32.gmra.mxu0 %v122
  %v258 = vpop.f32.mrf.mxu0
  %v259 = vadd.f32 %v91, %v258
  %260 = vmatmul.f32.gmra.mxu0 %v125
  %v261 = vpop.f32.mrf.mxu0
  %v262 = vadd.f32 %v96, %v261
  %263 = vmatmul.f32.gmra.mxu0 %v128
  %v264 = vpop.f32.mrf.mxu0
  %v265 = vadd.f32 %v101, %v264
  %266 = vmatmul.f32.gmra.mxu0 %v131
  %v267 = vpop.f32.mrf.mxu0
  %v268 = vadd.f32 %v106, %v267
  %269 = vdwg.mxu0
  %270 = vmatpush.xpose.msra.mxu0 %v227
  %271 = vmatpush.xpose.msra.mxu0 %v224
  %272 = vmatpush.xpose.msra.mxu0 %v221
  %273 = vmatpush.xpose.msra.mxu0 %v218
  %274 = vmatpush.xpose.msra.mxu0 %v215
  %275 = vmatpush.xpose.msra.mxu0 %v212
  %276 = vmatpush.xpose.msra.mxu0 %v209
  %277 = vmatpush.xpose.msra.mxu0 %v206
  %278 = vmatpush.xpose.msra.mxu0 %v203
  %279 = vmatpush.xpose.msra.mxu0 %v200
  %280 = vmatpush.xpose.msra.mxu0 %v197
  %281 = vmatpush.xpose.msra.mxu0 %v194
  %282 = vmatpush.xpose.msra.mxu0 %v191
  %283 = vmatpush.xpose.msra.mxu0 %v188
  %284 = vmatpush.xpose.msra.mxu0 %v185
  %285 = vmatpush.xpose.msra.mxu0 %v182
  %286 = vmatmul.f32.gmra.mxu0 %v110
  %v287 = vpop.f32.mrf.mxu0
  %v288 = vadd.f32 %v71, %v287
  %289 = vmatmul.f32.gmra.mxu0 %v113
  %v290 = vpop.f32.mrf.mxu0
  %v291 = vadd.f32 %v76, %v290
  %292 = vmatmul.f32.gmra.mxu0 %v116
  %v293 = vpop.f32.mrf.mxu0
  %v294 = vadd.f32 %v81, %v293
  %295 = vmatmul.f32.gmra.mxu0 %v119
  %v296 = vpop.f32.mrf.mxu0
  %v297 = vadd.f32 %v86, %v296
  %298 = vmatmul.f32.gmra.mxu0 %v122
  %v299 = vpop.f32.mrf.mxu0
  %v300 = vadd.f32 %v91, %v299
  %301 = vmatmul.f32.gmra.mxu0 %v125
  %v302 = vpop.f32.mrf.mxu0
  %v303 = vadd.f32 %v96, %v302
  %304 = vmatmul.f32.gmra.mxu0 %v128
  %v305 = vpop.f32.mrf.mxu0
  %v306 = vadd.f32 %v101, %v305
  %307 = vmatmul.f32.gmra.mxu0 %v131
  %v308 = vpop.f32.mrf.mxu0
  %v309 = vadd.f32 %v106, %v308
  %310 = vdwg.mxu0
  %v311 = vmax.f32 %v247, 0.0
  %v312 = vmax.f32 %v288, 0.0
  %v313 = vmax.f32 %v250, 0.0
  %v314 = vmax.f32 %v291, 0.0
  %v315 = vmax.f32 %v253, 0.0
  %v316 = vmax.f32 %v294, 0.0
  %v317 = vmax.f32 %v256, 0.0
  %v318 = vmax.f32 %v297, 0.0
  %v319 = vmax.f32 %v259, 0.0
  %v320 = vmax.f32 %v300, 0.0
  %v321 = vmax.f32 %v262, 0.0
  %v322 = vmax.f32 %v303, 0.0
  %v323 = vmax.f32 %v265, 0.0
  %v324 = vmax.f32 %v306, 0.0
  %v325 = vmax.f32 %v268, 0.0
  %v326 = vmax.f32 %v309, 0.0
  %v327 = vld [vmem:[%s3] sm:$0xf]
  %v328 = vld [vmem:[%s4] sm:$0xf]
  %330 = vset.pattern.permute.xlu0 0
  %331 = vperm.xlu0 %330, %v328
  %v332 = vpop.permute.xlu0 %331
  %vm334 = vcmask 523264
  %v336 = vsel %vm334, %v327, 0
  %338 = vmatpush.msra.mxu0 0.0
  %339 = vmatpush.msra.mxu0 0.0
  %340 = vmatpush.msra.mxu0 0.0
  %341 = vmatpush.msra.mxu0 0.0
  %342 = vmatpush.msra.mxu0 0.0
  %343 = vmatpush.msra.mxu0 0.0
  %344 = vmatpush.msra.mxu0 0.0
  %345 = vmatpush.msra.mxu0 0.0
  %346 = vmatpush.msra.mxu0 %v325
  %347 = vmatpush.msra.mxu0 %v323
  %348 = vmatpush.msra.mxu0 %v321
  %349 = vmatpush.msra.mxu0 %v319
  %350 = vmatpush.msra.mxu0 %v317
  %351 = vmatpush.msra.mxu0 %v315
  %352 = vmatpush.msra.mxu0 %v313
  %353 = vmatpush.msra.mxu0 %v311
  %354 = vmatmul.f32.gmra.mxu0 %v336
  %v355 = vpop.f32.mrf.mxu0
  %v356 = vadd.f32 %v332, %v355
  %357 = vdwg.mxu0
  %358 = vmatpush.msra.mxu0 0.0
  %359 = vmatpush.msra.mxu0 0.0
  %360 = vmatpush.msra.mxu0 0.0
  %361 = vmatpush.msra.mxu0 0.0
  %362 = vmatpush.msra.mxu0 0.0
  %363 = vmatpush.msra.mxu0 0.0
  %364 = vmatpush.msra.mxu0 0.0
  %365 = vmatpush.msra.mxu0 0.0
  %366 = vmatpush.msra.mxu0 %v326
  %367 = vmatpush.msra.mxu0 %v324
  %368 = vmatpush.msra.mxu0 %v322
  %369 = vmatpush.msra.mxu0 %v320
  %370 = vmatpush.msra.mxu0 %v318
  %371 = vmatpush.msra.mxu0 %v316
  %372 = vmatpush.msra.mxu0 %v314
  %373 = vmatpush.msra.mxu0 %v312
  %374 = vmatmul.f32.gmra.mxu0 %v336
  %v375 = vpop.f32.mrf.mxu0
  %v376 = vadd.f32 %v332, %v375
  %377 = vdwg.mxu0
  %v380 = vrot.slane %v376, 4
  %vm381 = vcmask 1043456
  %v382 = vsel %vm381, %v356, %v380
  %384 = vst [vmem:[%s5] sm:$0xff] %v382
  // Predicated region
  $region22: #{_dqn_forward_pallas_2d.1} parent=0 // pred_check
    _
  $region23: #{_dqn_forward_pallas_2d.1} parent=0 // pred_check_branch
    %386 = sbr.rel (0) target = $region25
  $region24: #{_dqn_forward_pallas_2d.1} parent=0 // pred_region
    _
  $region25: #{_dqn_forward_pallas_2d.1} parent=0 // pred_fallthru
    _
  // Predicated region
  $region26: #{_dqn_forward_pallas_2d.1} parent=0 // pred_check
    _
  $region27: #{_dqn_forward_pallas_2d.1} parent=0 // pred_check_branch
    %388 = sbr.rel (0) target = $region29
  $region28: #{_dqn_forward_pallas_2d.1} parent=0 // pred_region
    _
  $region29: #{_dqn_forward_pallas_2d.1} parent=0 // pred_fallthru
    _

</llo_original>
